<compile_context>
chip_gen: v6e
topology: v6e:2x2x1
jax: 0.10.0
libtpu: 0.0.40
codegen_flags: <defaults>
</compile_context>

<pallas_src>
import functools

import numpy as np

import jax
import jax.numpy as jnp
from jax.experimental import pallas as pl
from jax.experimental.pallas import tpu as pltpu


# ----------------------------------------------------------------------------
# Small runtime probe: pin down pltpu.roll's direction so the conv tap shifts
# cannot silently pick the wrong sign.  (Resolved eagerly before any jit.)
# ----------------------------------------------------------------------------
@functools.lru_cache(maxsize=None)
def _roll_moves_data_to_higher_indices():
    def probe(x_ref, o_ref):
        o_ref[...] = pltpu.roll(x_ref[...], 1, axis=1)

    x = jnp.arange(128, dtype=jnp.float32).reshape(1, 128)
    r = pl.pallas_call(
        probe, out_shape=jax.ShapeDtypeStruct((1, 128), jnp.float32))(x)
    # jnp.roll semantics: result[0] == x[-1] == 127 for shift=+1.
    return bool(r[0, 0] == 127.0)


# ----------------------------------------------------------------------------
# Layout helpers (internal layout: (N, D, C, H*W), bf16, plane on lanes)
# ----------------------------------------------------------------------------
def _ceil_to(x, m):
    return -(-x // m) * m


def _pick_zt(d):
    for t in (4, 2, 1):
        if d % t == 0:
            return min(t, d)
    return 1


def _to_internal(x_ncdhw):
    N, C, D, H, W = x_ncdhw.shape
    return jnp.transpose(x_ncdhw, (0, 2, 1, 3, 4)).reshape(
        N, D, C, H * W).astype(jnp.bfloat16)


def _to_ncdhw(x, H, W):
    N, D, C, _ = x.shape
    return jnp.transpose(x.reshape(N, D, C, H, W), (0, 2, 1, 3, 4))


@functools.lru_cache(maxsize=None)
def _plane_masks_np(H, W):
    """(9, H*W) 0/1 masks: entry (dy*3+dx, p)==1 iff the (dy-1, dx-1)-shifted
    source of flat plane position p lies inside the (H, W) plane."""
    h = np.arange(H)[:, None]
    w = np.arange(W)[None, :]
    out = np.zeros((9, H * W), np.float32)
    for dy in range(3):
        for dx in range(3):
            valid = ((h + dy - 1 >= 0) & (h + dy - 1 < H) &
                     (w + dx - 1 >= 0) & (w + dx - 1 < W))
            out[dy * 3 + dx] = valid.reshape(-1).astype(np.float32)
    return out


# ----------------------------------------------------------------------------
# Pallas kernels
# ----------------------------------------------------------------------------
def _conv3_kernel(a_ref, b_ref, w_ref, mask_ref, x_hbm_ref,
                  y_ref, stat_ref, buf_ref, sem_ref,
                  *, width, z_tile, apply_prenorm, roll_to_higher):
    """Z_TILE output z-slabs of a 3x3x3 'same' conv (no bias).

    Input is DMA'd manually from HBM as a (Z_TILE+2)-slab window (rolling ring
    buffer, next window prefetched).  Optionally the previous layer's folded
    GroupNorm+ReLU (a*x+b, relu) is applied to the freshly loaded window, with
    the z-halo slabs re-zeroed.  Depth taps are stacked along the contraction
    dim (K = 3*Cin), in-plane taps are lane rotations + border masks.
    Per-channel partial [sum, sum_sq] of the bf16 output are emitted per tile.
    """
    n = pl.program_id(0)
    zt = pl.program_id(1)
    nzt = pl.num_programs(1)
    slot = zt % 2

    def _win_copy(tile_idx, sl):
        return pltpu.make_async_copy(
            x_hbm_ref.at[n, pl.ds(tile_idx * z_tile, z_tile + 2)],
            buf_ref.at[sl],
            sem_ref.at[sl])

    @pl.when(zt == 0)
    def _():
        _win_copy(zt, slot).start()

    _win_copy(zt, slot).wait()

    @pl.when(zt + 1 < nzt)
    def _():
        _win_copy(zt + 1, 1 - slot).start()

    _, cout_p, hw = y_ref.shape
    cin_p = buf_ref.shape[2]

    x3 = buf_ref[slot]                                   # (Z_TILE+2, Cin_p, HW) bf16
    if apply_prenorm:
        xf = x3.astype(jnp.float32) * a_ref[...][None] + b_ref[...][None]
        x3 = jnp.maximum(xf, 0.0).astype(jnp.bfloat16)
        # Re-zero the z-halo slabs (the HBM halos are raw zeros; a*0+b != 0).
        g0 = (zt > 0).astype(x3.dtype)
        g1 = (zt < nzt - 1).astype(x3.dtype)
        x3 = jnp.concatenate(
            [x3[0:1] * g0, x3[1:z_tile + 1], x3[z_tile + 1:] * g1], axis=0)

    xw = x3.reshape((z_tile + 2) * cin_p, hw)            # depth taps on sublanes
    masks = mask_ref[...]                                # (9, HW) bf16

    accs = [jnp.zeros((cout_p, hw), jnp.float32) for _ in range(z_tile)]
    for dy in range(3):
        for dx in range(3):
            k = dy * 3 + dx
            s = (dy - 1) * width + (dx - 1)              # flat in-plane offset
            if s == 0:
                xk = xw
            else:
                shift = ((-s) if roll_to_higher else s) % hw
                xk = pltpu.roll(xw, shift, axis=1) if shift else xw
                xk = xk * masks[k:k + 1, :]
            wk = w_ref[k]                                # (Cout_p, 3*Cin_p) bf16
            for lz in range(z_tile):
                xs = xk[lz * cin_p:(lz + 3) * cin_p, :]  # (3*Cin_p, HW)
                accs[lz] += jnp.dot(wk, xs, preferred_element_type=jnp.float32)

    s1 = jnp.zeros((cout_p, 1), jnp.float32)
    s2 = jnp.zeros((cout_p, 1), jnp.float32)
    for lz in range(z_tile):
        yb = accs[lz].astype(y_ref.dtype)
        y_ref[lz] = yb
        yf = yb.astype(jnp.float32)
        s1 = s1 + jnp.sum(yf, axis=1, keepdims=True)
        s2 = s2 + jnp.sum(yf * yf, axis=1, keepdims=True)
    stat_ref[:, 0:1] = s1
    stat_ref[:, 1:2] = s2


def _gn_apply_kernel(y_ref, a_ref, b_ref, o_ref):
    """GroupNorm apply (folded affine a*x+b) + ReLU on a z-block of slabs."""
    y = y_ref[...].astype(jnp.float32)                   # (Z_TILE, C, HW)
    o = y * a_ref[...][None] + b_ref[...][None]
    o_ref[...] = jnp.maximum(o, 0.0).astype(o_ref.dtype)


def _heads_kernel(x_ref, w_ref, b_ref, p_ref, d_ref, *, z_tile):
    """Fused 1x1x1 heads: row 0 -> sigmoid prob (no bias), rows 1.. -> dist."""
    w = w_ref[...]
    b = b_ref[...]
    for lz in range(z_tile):
        y = jnp.dot(w, x_ref[lz], preferred_element_type=jnp.float32) + b
        p_ref[lz] = jax.nn.sigmoid(y[0:1, :]).astype(p_ref.dtype)
        d_ref[lz] = y[1:, :].astype(d_ref.dtype)


# ----------------------------------------------------------------------------
# Pallas wrappers
# ----------------------------------------------------------------------------
def conv3x3x3(x, w, H, W, prenorm=None):
    """3x3x3 'same' conv (bias-free) with optional fused GN+ReLU prologue.

    x: (N, D, Cin or Cin_p, H*W) bf16 ; w: (Cout, Cin, 3, 3, 3) f32.
    prenorm: None or (a, b) each (N, Cin_p) f32 -- previous layer's folded
    GroupNorm affine (relu(a*x+b) applied to every loaded input slab).
    Returns y_raw (N, D, Cout_p, H*W) bf16 and stats (N, Cout, 2) f32.
    """
    N, D, Cx, HW = x.shape
    assert HW == H * W
    Cout, Cin = w.shape[0], w.shape[1]
    Cin_p, Cout_p = _ceil_to(Cin, 16), _ceil_to(Cout, 16)
    assert Cx in (Cin, Cin_p)
    if Cx != Cin_p:
        x = jnp.pad(x, ((0, 0), (0, 0), (0, Cin_p - Cx), (0, 0)))
    wp = jnp.pad(w, ((0, Cout_p - Cout), (0, Cin_p - Cin),
                     (0, 0), (0, 0), (0, 0)))
    # (Cout_p, Cin_p, dz, dy, dx) -> (9 = dy*3+dx, Cout_p, 3*Cin_p = dz*Cin_p+ci)
    w9 = jnp.transpose(wp, (3, 4, 0, 2, 1)).reshape(
        9, Cout_p, 3 * Cin_p).astype(jnp.bfloat16)

    if prenorm is None:
        a = jnp.ones((N, Cin_p, 1), jnp.float32)
        b = jnp.zeros((N, Cin_p, 1), jnp.float32)
        apply_prenorm = False
    else:
        a, b = prenorm
        a = a.reshape(N, Cin_p, 1)
        b = b.reshape(N, Cin_p, 1)
        apply_prenorm = True

    masks = jnp.asarray(_plane_masks_np(H, W), dtype=jnp.bfloat16)
    xz = jnp.pad(x, ((0, 0), (1, 1), (0, 0), (0, 0)))    # zero z-halo slabs
    ZT = _pick_zt(D)
    NZT = D // ZT

    kernel = functools.partial(
        _conv3_kernel, width=W, z_tile=ZT, apply_prenorm=apply_prenorm,
        roll_to_higher=_roll_moves_data_to_higher_indices())
    y, stats = pl.pallas_call(
        kernel,
        out_shape=(jax.ShapeDtypeStruct((N, D, Cout_p, HW), jnp.bfloat16),
                   jax.ShapeDtypeStruct((N, NZT, Cout_p, 2), jnp.float32)),
        grid=(N, NZT),
        in_specs=[
            pl.BlockSpec((None, Cin_p, 1), lambda n, z: (n, 0, 0)),
            pl.BlockSpec((None, Cin_p, 1), lambda n, z: (n, 0, 0)),
            pl.BlockSpec((9, Cout_p, 3 * Cin_p), lambda n, z: (0, 0, 0)),
            pl.BlockSpec((9, HW), lambda n, z: (0, 0)),
            pl.BlockSpec(memory_space=pl.ANY),           # manual rolling-window DMA
        ],
        out_specs=(
            pl.BlockSpec((None, ZT, Cout_p, HW), lambda n, z: (n, z, 0, 0)),
            pl.BlockSpec((None, None, Cout_p, 2), lambda n, z: (n, z, 0, 0)),
        ),
        scratch_shapes=[
            pltpu.VMEM((2, ZT + 2, Cin_p, HW), jnp.bfloat16),
            pltpu.SemaphoreType.DMA((2,)),
        ],
        compiler_params=pltpu.CompilerParams(
            dimension_semantics=("parallel", "arbitrary"),
            vmem_limit_bytes=48 * 1024 * 1024),
    )(a, b, w9, masks, xz)
    stats_sum = stats.sum(axis=1)[:, :Cout, :]
    return y, stats_sum


def _gn_affine(stats, gamma, beta, num_groups, count, eps=1e-5):
    """Fold GroupNorm statistics into per-channel a*x+b (real channels)."""
    N, C, _ = stats.shape
    G = num_groups
    cg = C // G
    s1 = stats[:, :, 0].reshape(N, G, cg).sum(axis=2)
    s2 = stats[:, :, 1].reshape(N, G, cg).sum(axis=2)
    mean = s1 / count
    var = jnp.maximum(s2 / count - mean * mean, 0.0)
    inv = jax.lax.rsqrt(var + eps)
    mean_c = jnp.repeat(mean, cg, axis=1)
    inv_c = jnp.repeat(inv, cg, axis=1)
    a = inv_c * gamma[None, :]
    b = beta[None, :] - mean_c * a
    return a, b                                          # (N, C) each


def _pad_affine(a, b, c_pad):
    N, C = a.shape
    if c_pad != C:
        a = jnp.pad(a, ((0, 0), (0, c_pad - C)))
        b = jnp.pad(b, ((0, 0), (0, c_pad - C)))
    return a, b


def gn_relu_apply(y, a, b, H, W):
    """Standalone GroupNorm apply + ReLU (used only at ConvBlock boundaries)."""
    N, D, C, HW = y.shape
    ZT = _pick_zt(D)
    a3 = a.reshape(N, C, 1)
    b3 = b.reshape(N, C, 1)
    return pl.pallas_call(
        _gn_apply_kernel,
        out_shape=jax.ShapeDtypeStruct((N, D, C, HW), jnp.bfloat16),
        grid=(N, D // ZT),
        in_specs=[
            pl.BlockSpec((None, ZT, C, HW), lambda n, z: (n, z, 0, 0)),
            pl.BlockSpec((None, C, 1), lambda n, z: (n, 0, 0)),
            pl.BlockSpec((None, C, 1), lambda n, z: (n, 0, 0)),
        ],
        out_specs=pl.BlockSpec((None, ZT, C, HW), lambda n, z: (n, z, 0, 0)),
        compiler_params=pltpu.CompilerParams(
            dimension_semantics=("parallel", "parallel"),
            vmem_limit_bytes=32 * 1024 * 1024),
    )(y, a3, b3)


def _apply_conv_block(block_params, x, num_groups, size):
    """ConvBlock: [APRConv(3x3x3, bias=False) -> GroupNorm -> ReLU] * n.

    GN+ReLU of every layer except the last is fused into the next conv's
    prologue; the last one runs as a standalone Pallas kernel."""
    D, H, W = size
    prenorm = None
    y = x
    cout = None
    for p in block_params:
        cout = p["w"].shape[0]
        y, stats = conv3x3x3(y, p["w"], H, W, prenorm=prenorm)
        cg = cout // num_groups
        a, b = _gn_affine(stats, p["gamma"], p["beta"], num_groups,
                          count=float(cg * D * H * W))
        prenorm = _pad_affine(a, b, _ceil_to(cout, 16))
    out = gn_relu_apply(y, *prenorm, H, W)
    return out[:, :, :cout, :]


def heads_1x1(x, prob_w, dist_w, dist_b):
    """Fused 1x1x1 heads: sigmoid prob (bias-free) + dist (with bias)."""
    N, D, Cf, HW = x.shape
    R = dist_w.shape[0]
    ZT = _pick_zt(D)
    wh = jnp.concatenate([prob_w.reshape(1, Cf), dist_w.reshape(R, Cf)],
                         axis=0).astype(jnp.bfloat16)    # (1+R, Cf)
    bh = jnp.concatenate([jnp.zeros((1,), jnp.float32),
                          dist_b.astype(jnp.float32)]).reshape(1 + R, 1)
    prob, dist = pl.pallas_call(
        functools.partial(_heads_kernel, z_tile=ZT),
        out_shape=(jax.ShapeDtypeStruct((N, D, 1, HW), jnp.float32),
                   jax.ShapeDtypeStruct((N, D, R, HW), jnp.float32)),
        grid=(N, D // ZT),
        in_specs=[
            pl.BlockSpec((None, ZT, Cf, HW), lambda n, z: (n, z, 0, 0)),
            pl.BlockSpec((1 + R, Cf), lambda n, z: (0, 0)),
            pl.BlockSpec((1 + R, 1), lambda n, z: (0, 0)),
        ],
        out_specs=(
            pl.BlockSpec((None, ZT, 1, HW), lambda n, z: (n, z, 0, 0)),
            pl.BlockSpec((None, ZT, R, HW), lambda n, z: (n, z, 0, 0)),
        ),
        compiler_params=pltpu.CompilerParams(
            dimension_semantics=("parallel", "parallel"),
            vmem_limit_bytes=32 * 1024 * 1024),
    )(x, wh, bh)
    return prob, dist


# ----------------------------------------------------------------------------
# Dense down / up sampling (XLA) on the (N, D, C, H*W) layout
# ----------------------------------------------------------------------------
def maxpool2(x, H, W):
    N, D, C, _ = x.shape
    x8 = x.reshape(N, D // 2, 2, C, H // 2, 2, W // 2, 2)
    return x8.max(axis=(2, 5, 7)).reshape(N, D // 2, C, (H // 2) * (W // 2))


def upsample2(x, H, W):
    N, D, C, _ = x.shape
    x5 = x.reshape(N, D, C, H, W)
    x5 = jnp.repeat(x5, 2, axis=1)
    x5 = jnp.repeat(x5, 2, axis=3)
    x5 = jnp.repeat(x5, 2, axis=4)
    return x5.reshape(N, 2 * D, C, 4 * H * W)


# ----------------------------------------------------------------------------
# Parameter init (deterministic) mirroring HybridStardistUNet.__init__
# ----------------------------------------------------------------------------
def _init_conv_w(key, cout, cin, ksz=(3, 3, 3)):
    fan_in = cin * ksz[0] * ksz[1] * ksz[2]
    return jax.random.normal(key, (cout, cin) + tuple(ksz),
                             jnp.float32) * (2.0 / fan_in) ** 0.5


def _init_conv_block(keys, cin, cout, num_blocks):
    blocks = []
    ch = cin
    for _ in range(num_blocks):
        blocks.append({
            "w": _init_conv_w(next(keys), cout, ch),    # conv bias=False (GN follows)
            "gamma": jnp.ones((cout,), jnp.float32),    # torch GroupNorm init
            "beta": jnp.zeros((cout,), jnp.float32),
        })
        ch = cout
    return blocks


def init_hybrid_stardist_unet(key, in_channels, n_rays, depth=3, apr_depth=2,
                              kernel_size=3, dims=3, n_filters_base=16,
                              n_conv_per_block=2, output_level_delta=0,
                              net_conv_after_unet=None):
    assert apr_depth >= 0 and output_level_delta <= apr_depth
    ksz = (kernel_size,) * dims if isinstance(kernel_size, int) else tuple(kernel_size)
    while len(ksz) < 3:
        ksz = (1,) + ksz
    # TODO(synk): the fused Pallas conv kernel is specialised to 3x3x3 stencils
    # (heads are 1x1x1); other kernel sizes are not supported.
    assert ksz == (3, 3, 3), "only kernel_size=3 supported by the Pallas conv"
    num_groups = n_filters_base
    n_filters = [n_filters_base * 2 ** i for i in range(depth + 1)]

    def keygen(k):
        while True:
            k, sub = jax.random.split(k)
            yield sub
    keys = keygen(key)

    encoder = [_init_conv_block(keys, in_channels, n_filters_base, n_conv_per_block)]
    for i in range(depth):
        encoder.append(_init_conv_block(keys, n_filters[i], n_filters[i + 1],
                                        n_conv_per_block))
    decoder = []
    for i in reversed(range(output_level_delta, depth)):
        decoder.append(_init_conv_block(keys, n_filters[i + 1] + n_filters[i],
                                        n_filters[i], n_conv_per_block))
    conv_after_unet = None
    if net_conv_after_unet is not None:
        conv_after_unet = _init_conv_block(keys, n_filters[output_level_delta],
                                           net_conv_after_unet, 1)
    n_features = net_conv_after_unet if net_conv_after_unet else n_filters[output_level_delta]
    return {
        "num_groups": num_groups,
        "encoder": encoder,
        "decoder": decoder,
        "conv_after_unet": conv_after_unet,
        "prob_w": _init_conv_w(next(keys), 1, n_features, (1, 1, 1)),   # bias=False
        "dist_w": _init_conv_w(next(keys), n_rays, n_features, (1, 1, 1)),
        "dist_b": jax.random.uniform(next(keys), (n_rays,), jnp.float32, -0.1, 0.1),
    }


# ----------------------------------------------------------------------------
# Forward pass (mirrors HybridStardistUNet.forward on a dense grid)
# ----------------------------------------------------------------------------
def hybrid_stardist_unet_forward(params, x_ncdhw, aprs=None, level_deltas=None):
    # TODO(synk): aprs / level_deltas are APR structures with no dense
    # equivalent; the dense forward corresponds to level_deltas == 0.
    del aprs, level_deltas
    N, _, D, H, W = x_ncdhw.shape
    G = params["num_groups"]
    x = _to_internal(x_ncdhw)

    # encoder
    sizes = [(D, H, W)]
    feats = [_apply_conv_block(params["encoder"][0], x, G, sizes[0])]
    for blk in params["encoder"][1:]:
        d, h, w = sizes[-1]
        t = maxpool2(feats[-1], h, w)        # TODO(synk): APR DownConv -> dense 2x max-pool
        size = (d // 2, h // 2, w // 2)
        feats.append(_apply_conv_block(blk, t, G, size))
        sizes.append(size)

    # decoder
    xu = feats[-1]
    size = sizes[-1]
    for i, blk in enumerate(params["decoder"]):
        skip = feats[-(i + 2)]
        skip_size = sizes[-(i + 2)]
        xu = upsample2(xu, size[1], size[2])  # TODO(synk): fold upsample+concat into decoder conv
        size = skip_size
        xu = jnp.concatenate([xu, skip], axis=2)
        xu = _apply_conv_block(blk, xu, G, size)

    if params["conv_after_unet"] is not None:
        xu = _apply_conv_block(params["conv_after_unet"], xu, G, size)

    # fused 1x1x1 heads
    prob4, dist4 = heads_1x1(xu, params["prob_w"], params["dist_w"], params["dist_b"])
    Df, Hf, Wf = size
    R = dist4.shape[2]
    prob = jnp.transpose(prob4.reshape(N, Df, 1, Hf, Wf), (0, 2, 1, 3, 4))
    dist = jnp.transpose(dist4.reshape(N, Df, R, Hf, Wf), (0, 2, 1, 3, 4))
    return prob, dist


# ----------------------------------------------------------------------------
# Self-checks of the fused conv / GroupNorm kernels against XLA references
# ----------------------------------------------------------------------------
def _reference_conv_gn_relu(x_ncdhw, w, gamma, beta, num_groups, eps=1e-5):
    xb = x_ncdhw.astype(jnp.bfloat16)
    wb = w.astype(jnp.bfloat16)
    y = jax.lax.conv_general_dilated(
        xb, wb, window_strides=(1, 1, 1), padding="SAME",
        dimension_numbers=("NCDHW", "OIDHW", "NCDHW"),
        preferred_element_type=jnp.float32)
    y = y.astype(jnp.bfloat16).astype(jnp.float32)
    N, C, D, H, W = y.shape
    G = num_groups
    cg = C // G
    yg = y.reshape(N, G, cg, D, H, W)
    mean = yg.mean(axis=(2, 3, 4, 5), keepdims=True)
    var = jnp.maximum((yg * yg).mean(axis=(2, 3, 4, 5), keepdims=True) - mean ** 2, 0.0)
    yn = ((yg - mean) * jax.lax.rsqrt(var + eps)).reshape(N, C, D, H, W)
    out = yn * gamma.reshape(1, C, 1, 1, 1) + beta.reshape(1, C, 1, 1, 1)
    return jnp.maximum(out, 0.0)


def _reference_block(x_ncdhw, block_params, num_groups):
    y = x_ncdhw
    for p in block_params:
        y = _reference_conv_gn_relu(y, p["w"], p["gamma"], p["beta"], num_groups)
        y = y.astype(jnp.bfloat16).astype(jnp.float32)   # match bf16 hand-off
    return y


def _self_check():
    _roll_moves_data_to_higher_indices()                 # resolve probe eagerly

    key = jax.random.PRNGKey(42)
    ks = jax.random.split(key, 8)

    # (1) single Conv+GN+ReLU layer (no prenorm fusion, NZT > 1 -> DMA prefetch)
    N, Cin, D, H, W = 2, 5, 8, 8, 16
    Cout, G = 16, 8
    x = jax.random.normal(ks[0], (N, Cin, D, H, W), jnp.float32)
    p = {"w": jax.random.normal(ks[1], (Cout, Cin, 3, 3, 3), jnp.float32) * 0.2,
         "gamma": jax.random.uniform(ks[2], (Cout,), jnp.float32, 0.5, 1.5),
         "beta": jax.random.normal(ks[3], (Cout,), jnp.float32) * 0.1}
    mine = _to_ncdhw(_apply_conv_block([p], _to_internal(x), G, (D, H, W)), H, W)
    ref = _reference_block(x, [p], G)
    err1 = float(jnp.max(jnp.abs(mine.astype(jnp.float32) - ref)))
    assert np.isfinite(err1) and err1 < 0.15, f"single-layer check failed: {err1}"

    # (2) two-layer ConvBlock (fused GN prologue + channel padding + HW < 128)
    N, Cin, D, H, W = 1, 3, 8, 8, 8
    Cout, G = 8, 8
    x = jax.random.normal(ks[4], (N, Cin, D, H, W), jnp.float32)
    blk = [{"w": jax.random.normal(ks[5], (Cout, Cin, 3, 3, 3), jnp.float32) * 0.3,
            "gamma": jnp.ones((Cout,), jnp.float32),
            "beta": jnp.zeros((Cout,), jnp.float32)},
           {"w": jax.random.normal(ks[6], (Cout, Cout, 3, 3, 3), jnp.float32) * 0.2,
            "gamma": jax.random.uniform(ks[7], (Cout,), jnp.float32, 0.5, 1.5),
            "beta": jnp.zeros((Cout,), jnp.float32)}]
    mine = _to_ncdhw(_apply_conv_block(blk, _to_internal(x), G, (D, H, W)), H, W)
    ref = _reference_block(x, blk, G)
    err2 = float(jnp.max(jnp.abs(mine.astype(jnp.float32) - ref)))
    assert np.isfinite(err2) and err2 < 0.2, f"conv-block check failed: {err2}"


# ----------------------------------------------------------------------------
if __name__ == "__main__":
    _self_check()

    key = jax.random.PRNGKey(0)
    k_param, k_x = jax.random.split(key)

    in_channels, n_rays = 2, 8
    params = init_hybrid_stardist_unet(
        k_param, in_channels=in_channels, n_rays=n_rays,
        depth=2, apr_depth=2, kernel_size=3, dims=3,
        n_filters_base=8, n_conv_per_block=2, output_level_delta=0,
        net_conv_after_unet=None)

    N, D, H, W = 2, 8, 16, 16
    x = jax.random.normal(k_x, (N, in_channels, D, H, W), jnp.float32)

    fwd = jax.jit(lambda xv: hybrid_stardist_unet_forward(params, xv))
    prob, dist = fwd(x)
    jax.block_until_ready((prob, dist))
    assert prob.shape == (N, 1, D, H, W)
    assert dist.shape == (N, n_rays, D, H, W)
    assert bool(jnp.all(jnp.isfinite(prob))) and bool(jnp.all(jnp.isfinite(dist)))
    assert bool(jnp.all((prob >= 0.0) & (prob <= 1.0)))
    print("KERNEL_OK")
</pallas_src>

<mosaic_0001>
module attributes {stable_mosaic.version = 11 : i64} {
  func.func @probe(%arg0: memref<1x128xf32, #tpu.memory_space<vmem>>, %arg1: memref<1x128xf32, #tpu.memory_space<vmem>>) attributes {dimension_semantics = [], scalar_prefetch = 0 : i64, scratch_operands = 0 : i64, tpu.core_type = #tpu.core_type<tc>} {
    %c0 = arith.constant 0 : index
    %c0_0 = arith.constant 0 : index
    %0 = vector.load %arg0[%c0, %c0_0] : memref<1x128xf32, #tpu.memory_space<vmem>>, vector<1x128xf32>
    %c1_i32 = arith.constant 1 : i32
    %1 = tpu.dynamic_rotate %0 by %c1_i32 dim 1 : vector<1x128xf32>, i32 -> vector<1x128xf32>
    %c0_1 = arith.constant 0 : index
    %c0_2 = arith.constant 0 : index
    %2 = vector.load %arg1[%c0_1, %c0_2] : memref<1x128xf32, #tpu.memory_space<vmem>>, vector<1x128xf32>
    tpu.vector_store %arg1[%c0_1, %c0_2], %1 {strides = array<i32>} : memref<1x128xf32, #tpu.memory_space<vmem>>, vector<1x128xf32>,
    return
  }
}

</mosaic_0001>

<llo_original>
// kernel: tpu_custom_call.1
$region0: #{tpu_custom_call.1}
  #allocation0 [shape = 'u32[]', space=smem, size = 0x4, offset = 0x4, fixed_abs, tag = 'smem constant byte address 0x4 - core index']
  #allocation1 [shape = 'u32[144,128]{1,0:T(1,128)}', space=vmem, size = 0x12000, scoped, tag = 'internal scratch']
  %s0 = inlined_call_operand.hbm [shape: f32[1,128], index: 0, kind: input, shape index: {}]
  %s1 = inlined_call_operand.hbm [shape: f32[1,128], index: 1, kind: output, shape index: {}]
  %s2 = sld [smem:[#allocation0]]
  $region18: #{tpu_custom_call.1} parent=0
    _
  %s4 = ssub.s32 1, %s2
  %s5 = scalar_select 0, %s4, %s2
  $region1: #{tpu_custom_call.1} parent=0
    #allocation2 [shape = 'u8[512]{0}', space=vmem, size = 0x400, scoped, tag = 'input window, operand 0, single buffered']
    #allocation3 [shape = 's32[1]{0}', space=sflag, size = 0x4, scoped, tag = 'scoped memory for tpu_custom_call.1']
    #allocation4 [shape = 's32[1]{0}', space=sflag, size = 0x4, scoped, tag = 'scoped memory for tpu_custom_call.1']
    #allocation5 [shape = 'u8[512]{0}', space=vmem, size = 0x400, scoped, tag = 'output window, operand 0, single buffered']
    %6 = vsyncpa [#allocation3], 0
    %7 = vsyncpa [#allocation4], 0
    // Predicated region
    $region2: #{tpu_custom_call.1} parent=1 // pred_check
      _
    $region3: #{tpu_custom_call.1} parent=1 // pred_check_branch
      %9 = sbr.rel (0) target = $region5
    $region4: #{tpu_custom_call.1} parent=1 // pred_region
      %s11 = ssub.s32 16, 16
      %12 = vsyncadd [#allocation3], %s11
      %s14 = sshll.u32 [#allocation2], 4
      %s15 = int_to_ptr.vmem [resolvable:$true] %s14
      %17 = dma.hbm_to_vmem [thread:$0]  %s0, 16, %s15, [#allocation3]
    $region5: #{tpu_custom_call.1} parent=1 // pred_fallthru
      _
    // Predicated region
    $region6: #{tpu_custom_call.1} parent=1 // pred_check
      _
    $region7: #{tpu_custom_call.1} parent=1 // pred_check_branch
      %19 = sbr.rel (0) target = $region9
    $region8: #{tpu_custom_call.1} parent=1 // pred_region
      %20 = dma.done [#allocation3], 16
    $region9: #{tpu_custom_call.1} parent=1 // pred_fallthru
      _
    %v21 = vld [vmem:[#allocation2] sm:$0x1]
    %22 = vrot.lane.b32.xlu0 %v21, 1
    %v23 = vpop.permute.xlu0 %22
    %24 = vst [vmem:[#allocation5] sm:$0x1] %v23
    // Predicated region
    $region10: #{tpu_custom_call.1} parent=1 // pred_check
      _
    $region11: #{tpu_custom_call.1} parent=1 // pred_check_branch
      %26 = sbr.rel (0) target = $region13
    $region12: #{tpu_custom_call.1} parent=1 // pred_region
      %s28 = ssub.s32 16, 16
      %29 = vsyncadd [#allocation4], %s28
      %s31 = sshll.u32 [#allocation5], 4
      %s32 = int_to_ptr.vmem [resolvable:$true] %s31
      %34 = dma.vmem_to_hbm [thread:$0]  %s32, 16, %s1, [#allocation4]
    $region13: #{tpu_custom_call.1} parent=1 // pred_fallthru
      _
    // Predicated region
    $region14: #{tpu_custom_call.1} parent=1 // pred_check
      _
    $region15: #{tpu_custom_call.1} parent=1 // pred_check_branch
      %36 = sbr.rel (0) target = $region17
    $region16: #{tpu_custom_call.1} parent=1 // pred_region
      %37 = dma.done [#allocation4], 16
    $region17: #{tpu_custom_call.1} parent=1 // pred_fallthru
      _
    %38 = vsyncpa [#allocation3], 1
    %39 = vsyncpa [#allocation4], 1

</llo_original>
